<compile_context>
chip_gen: v5e
topology: v5e:2x2
jax: 0.10.0
libtpu: 0.0.40
codegen_flags: <defaults>
</compile_context>

<pallas_src>
import math

import jax
import jax.numpy as jnp
from jax.experimental import pallas as pl
from jax.experimental.pallas import tpu as pltpu

# Keep f32 matmuls exact both inside the kernels and in the pure-JAX reference
# so the correctness check below is meaningful.
jax.config.update("jax_default_matmul_precision", "highest")

D_MODEL = 64
D_IN = 10
D_H1 = 16
D_H2 = 32
D_K = 128
D_V = 128
N_HEADS = 6
D_FF = 256
N_LAYERS = 6
D_DNN1 = 64
D_DNN2 = 32
D_OUT = 6
_LN_EPS = 1e-5
_ATTN_SCALE = 1.0 / math.sqrt(D_K)

# Row-tile upper bound: big enough to amortize the ~0.35us per-grid-step
# overhead, small enough to fit the 16 MiB default scoped VMEM on v5e once the
# narrow last dims pad to 128 lanes (double-buffered).
_MAX_ROW_TILE = 1024


def _round_up(x, m):
    return ((x + m - 1) // m) * m


def _pick_row_tile(n):
    return min(_MAX_ROW_TILE, _round_up(n, 8))


def _layer_norm(x, eps=_LN_EPS):
    # nn.LayerNorm(d_model) is constructed fresh inside the PyTorch forward, so
    # its affine params are the defaults (gamma=1, beta=0): pure normalization.
    mu = jnp.mean(x, axis=-1, keepdims=True)
    var = jnp.mean(jnp.square(x - mu), axis=-1, keepdims=True)
    return (x - mu) * jax.lax.rsqrt(var + eps)


# ---------------------------------------------------------------------------
# Kernel 1: ini_embeding MLP fused with the positional-encoding add.
# ---------------------------------------------------------------------------
def _embed_pe_kernel(x_ref, pe_ref, w1_ref, w2_ref, w3_ref, o_ref):
    # x: (T, 10), pe: (T, 64), w1: (10,16), w2: (16,32), w3: (32,64)
    x = x_ref[...]
    h1 = jnp.tanh(jnp.dot(x, w1_ref[...], preferred_element_type=jnp.float32))
    h2 = jnp.tanh(jnp.dot(h1, w2_ref[...], preferred_element_type=jnp.float32))
    h3 = jnp.dot(h2, w3_ref[...], preferred_element_type=jnp.float32)
    o_ref[...] = (h3 + pe_ref[...]).astype(o_ref.dtype)


def embed_pe_forward(x, emb_w, pe):
    """x: (batch, seq, 10) -> (batch, seq, 64); adds pe[:seq] per position."""
    b, s, _ = x.shape
    n = b * s
    x2 = x.reshape(n, D_IN)
    pe_rows = jnp.broadcast_to(pe[None, :s, :], (b, s, D_MODEL)).reshape(n, D_MODEL)

    tile = _pick_row_tile(n)
    n_pad = _round_up(n, tile)
    if n_pad != n:
        x2 = jnp.pad(x2, ((0, n_pad - n), (0, 0)))
        pe_rows = jnp.pad(pe_rows, ((0, n_pad - n), (0, 0)))

    out = pl.pallas_call(
        _embed_pe_kernel,
        out_shape=jax.ShapeDtypeStruct((n_pad, D_MODEL), x.dtype),
        grid=(n_pad // tile,),
        in_specs=[
            pl.BlockSpec((tile, D_IN), lambda i: (i, 0)),
            pl.BlockSpec((tile, D_MODEL), lambda i: (i, 0)),
            pl.BlockSpec((D_IN, D_H1), lambda i: (0, 0)),
            pl.BlockSpec((D_H1, D_H2), lambda i: (0, 0)),
            pl.BlockSpec((D_H2, D_MODEL), lambda i: (0, 0)),
        ],
        out_specs=pl.BlockSpec((tile, D_MODEL), lambda i: (i, 0)),
        compiler_params=pltpu.CompilerParams(dimension_semantics=("parallel",)),
    )(x2, pe_rows, *emb_w)
    return out[:n].reshape(b, s, D_MODEL)


# ---------------------------------------------------------------------------
# Kernel 2: one fused EncoderLayer (MHA + residual/LN + FFN + residual/LN).
# ---------------------------------------------------------------------------
def _encoder_layer_kernel(x_ref, wq_ref, wk_ref, wv_ref, wo_ref, w1_ref, w2_ref,
                          o_ref):
    x = x_ref[0]  # (S, 64)
    q = jnp.dot(x, wq_ref[...], preferred_element_type=jnp.float32)  # (S, 768)
    k = jnp.dot(x, wk_ref[...], preferred_element_type=jnp.float32)
    v = jnp.dot(x, wv_ref[...], preferred_element_type=jnp.float32)
    wo = wo_ref[...]  # (768, 64)

    attn_out = jnp.zeros((x.shape[0], D_MODEL), jnp.float32)
    for h in range(N_HEADS):  # static unroll; lane-aligned 128-wide slices
        lo, hi = h * D_K, (h + 1) * D_K
        qh = q[:, lo:hi]
        kh = k[:, lo:hi]
        vh = v[:, lo:hi]
        # scores = qh @ kh^T / sqrt(d_k), contracted on the 128-dim (no
        # explicit transpose materialized).
        scores = jax.lax.dot_general(
            qh, kh, (((1,), (1,)), ((), ())),
            preferred_element_type=jnp.float32) * _ATTN_SCALE
        m = jnp.max(scores, axis=-1, keepdims=True)
        p = jnp.exp(scores - m)
        attn = p / jnp.sum(p, axis=-1, keepdims=True)
        ctx = jnp.dot(attn, vh, preferred_element_type=jnp.float32)  # (S, 128)
        # Accumulate this head's slice of the output projection (avoids a
        # concat): ctx_h @ Wo[h*128:(h+1)*128, :].
        attn_out = attn_out + jnp.dot(ctx, wo[lo:hi, :],
                                      preferred_element_type=jnp.float32)

    y = _layer_norm(attn_out + x)
    f = jnp.maximum(jnp.dot(y, w1_ref[...], preferred_element_type=jnp.float32),
                    0.0)
    f = jnp.dot(f, w2_ref[...], preferred_element_type=jnp.float32)
    o_ref[0] = _layer_norm(f + y).astype(o_ref.dtype)


def encoder_layer_forward(x, lw):
    """x: (batch, seq, 64) -> (batch, seq, 64)."""
    b, s, dm = x.shape
    return pl.pallas_call(
        _encoder_layer_kernel,
        out_shape=jax.ShapeDtypeStruct((b, s, dm), x.dtype),
        grid=(b,),
        in_specs=[
            pl.BlockSpec((1, s, dm), lambda i: (i, 0, 0)),
            pl.BlockSpec((dm, N_HEADS * D_K), lambda i: (0, 0)),
            pl.BlockSpec((dm, N_HEADS * D_K), lambda i: (0, 0)),
            pl.BlockSpec((dm, N_HEADS * D_V), lambda i: (0, 0)),
            pl.BlockSpec((N_HEADS * D_V, dm), lambda i: (0, 0)),
            pl.BlockSpec((dm, D_FF), lambda i: (0, 0)),
            pl.BlockSpec((D_FF, dm), lambda i: (0, 0)),
        ],
        out_specs=pl.BlockSpec((1, s, dm), lambda i: (i, 0, 0)),
        compiler_params=pltpu.CompilerParams(dimension_semantics=("parallel",)),
    )(x, lw["wq"], lw["wk"], lw["wv"], lw["wo"], lw["w1"], lw["w2"])


# ---------------------------------------------------------------------------
# Kernel 3: DNN head (Linear 64->64 ReLU 64->32 ReLU 32->6, no bias).
# ---------------------------------------------------------------------------
def _dnn_kernel(x_ref, w1_ref, w2_ref, w3_ref, o_ref):
    x = x_ref[...]
    h1 = jnp.maximum(jnp.dot(x, w1_ref[...], preferred_element_type=jnp.float32),
                     0.0)
    h2 = jnp.maximum(jnp.dot(h1, w2_ref[...], preferred_element_type=jnp.float32),
                     0.0)
    o_ref[...] = jnp.dot(h2, w3_ref[...],
                         preferred_element_type=jnp.float32).astype(o_ref.dtype)


def dnn_forward(x, dnn_w):
    """x: (batch, seq, 64) -> (batch, seq, 6)."""
    b, s, _ = x.shape
    n = b * s
    x2 = x.reshape(n, D_MODEL)

    tile = _pick_row_tile(n)
    n_pad = _round_up(n, tile)
    if n_pad != n:
        x2 = jnp.pad(x2, ((0, n_pad - n), (0, 0)))

    out = pl.pallas_call(
        _dnn_kernel,
        out_shape=jax.ShapeDtypeStruct((n_pad, D_OUT), x.dtype),
        grid=(n_pad // tile,),
        in_specs=[
            pl.BlockSpec((tile, D_MODEL), lambda i: (i, 0)),
            pl.BlockSpec((D_MODEL, D_DNN1), lambda i: (0, 0)),
            pl.BlockSpec((D_DNN1, D_DNN2), lambda i: (0, 0)),
            pl.BlockSpec((D_DNN2, D_OUT), lambda i: (0, 0)),
        ],
        out_specs=pl.BlockSpec((tile, D_OUT), lambda i: (i, 0)),
        compiler_params=pltpu.CompilerParams(dimension_semantics=("parallel",)),
    )(x2, *dnn_w)
    return out[:n].reshape(b, s, D_OUT)


# ---------------------------------------------------------------------------
# Full forward pass + parameter / PE-table construction.
# ---------------------------------------------------------------------------
def positional_encoding_table(max_len=300, d=D_MODEL):
    position = jnp.arange(max_len, dtype=jnp.float32)[:, None]
    div_term = jnp.exp(jnp.arange(0, d, 2, dtype=jnp.float32)
                       * (-math.log(200.0) / d))
    ang = position * div_term                                   # (max_len, d/2)
    pe = jnp.stack([jnp.sin(ang), jnp.cos(ang)], axis=-1)       # even=sin, odd=cos
    return pe.reshape(max_len, d)


def dt_transformer_forward(x, params, pe):
    """x: (batch, seq, 10) -> (batch, seq, 6). Same math as DT_transformer."""
    # TODO(synk): nn.Dropout(p=0.01) in PositionalEncoding is treated as
    # inference-mode identity (no RNG mask applied).
    h = embed_pe_forward(x, params["emb"], pe)
    for lw in params["layers"]:
        h = encoder_layer_forward(h, lw)
    return dnn_forward(h, params["dnn"])


def init_params(key):
    """Deterministic synthetic weights, Kaiming-uniform-ish like nn.Linear.

    PyTorch stores Linear weights as (out, in); we keep them transposed as
    (in, out) so every kernel computes x @ w directly (same math as x @ W.T).
    """
    keys = jax.random.split(key, 2 + N_LAYERS)

    def uinit(k, fan_in, shape):
        bound = 1.0 / math.sqrt(fan_in)
        return jax.random.uniform(k, shape, jnp.float32, -bound, bound)

    ke = jax.random.split(keys[0], 3)
    emb = (uinit(ke[0], D_IN, (D_IN, D_H1)),
           uinit(ke[1], D_H1, (D_H1, D_H2)),
           uinit(ke[2], D_H2, (D_H2, D_MODEL)))

    layers = []
    for li in range(N_LAYERS):
        kl = jax.random.split(keys[1 + li], 6)
        layers.append(dict(
            wq=uinit(kl[0], D_MODEL, (D_MODEL, N_HEADS * D_K)),
            wk=uinit(kl[1], D_MODEL, (D_MODEL, N_HEADS * D_K)),
            wv=uinit(kl[2], D_MODEL, (D_MODEL, N_HEADS * D_V)),
            wo=uinit(kl[3], N_HEADS * D_V, (N_HEADS * D_V, D_MODEL)),
            w1=uinit(kl[4], D_MODEL, (D_MODEL, D_FF)),
            w2=uinit(kl[5], D_FF, (D_FF, D_MODEL)),
        ))

    kd = jax.random.split(keys[1 + N_LAYERS], 3)
    dnn = (uinit(kd[0], D_MODEL, (D_MODEL, D_DNN1)),
           uinit(kd[1], D_DNN1, (D_DNN1, D_DNN2)),
           uinit(kd[2], D_DNN2, (D_DNN2, D_OUT)))

    return dict(emb=emb, layers=layers, dnn=dnn)


# ---------------------------------------------------------------------------
# Pure-JAX reference (same math, no Pallas) for the correctness check.
# ---------------------------------------------------------------------------
def dt_transformer_ref(x, params, pe):
    w1, w2, w3 = params["emb"]
    h = jnp.dot(jnp.tanh(jnp.dot(jnp.tanh(jnp.dot(x, w1)), w2)), w3)
    h = h + pe[None, :x.shape[1], :]
    for lw in params["layers"]:
        b, s, dm = h.shape
        q = (h @ lw["wq"]).reshape(b, s, N_HEADS, D_K).transpose(0, 2, 1, 3)
        k = (h @ lw["wk"]).reshape(b, s, N_HEADS, D_K).transpose(0, 2, 1, 3)
        v = (h @ lw["wv"]).reshape(b, s, N_HEADS, D_V).transpose(0, 2, 1, 3)
        scores = jnp.einsum("bhqd,bhkd->bhqk", q, k) * _ATTN_SCALE
        attn = jax.nn.softmax(scores, axis=-1)
        ctx = jnp.einsum("bhqk,bhkd->bhqd", attn, v)
        ctx = ctx.transpose(0, 2, 1, 3).reshape(b, s, N_HEADS * D_V)
        y = _layer_norm(ctx @ lw["wo"] + h)
        f = jnp.maximum(y @ lw["w1"], 0.0) @ lw["w2"]
        h = _layer_norm(f + y)
    d1, d2, d3 = params["dnn"]
    return jnp.maximum(jnp.maximum(h @ d1, 0.0) @ d2, 0.0) @ d3


if __name__ == "__main__":
    key = jax.random.PRNGKey(0)
    kx, kp = jax.random.split(key)

    batch, seq = 2, 8
    x = jax.random.normal(kx, (batch, seq, D_IN), dtype=jnp.float32)
    params = init_params(kp)
    pe = positional_encoding_table()

    out = dt_transformer_forward(x, params, pe)
    out = jax.block_until_ready(out)

    ref = dt_transformer_ref(x, params, pe)
    assert out.shape == (batch, seq, D_OUT)
    assert jnp.allclose(out, ref, atol=2e-4, rtol=2e-4), \
        float(jnp.max(jnp.abs(out - ref)))

    print("KERNEL_OK")
</pallas_src>

<mosaic_0001>
module attributes {stable_mosaic.version = 11 : i64} {
  func.func @_embed_pe_kernel(%arg0: i32, %arg1: memref<16x10xf32, #tpu.memory_space<vmem>>, %arg2: memref<16x64xf32, #tpu.memory_space<vmem>>, %arg3: memref<10x16xf32, #tpu.memory_space<vmem>>, %arg4: memref<16x32xf32, #tpu.memory_space<vmem>>, %arg5: memref<32x64xf32, #tpu.memory_space<vmem>>, %arg6: memref<16x64xf32, #tpu.memory_space<vmem>>) attributes {dimension_semantics = [#tpu.dimension_semantics<parallel>], iteration_bounds = array<i64: 1>, scalar_prefetch = 0 : i64, scratch_operands = 0 : i64, tpu.core_type = #tpu.core_type<tc>, window_params = [{transform_indices = @transform_0, window_bounds = array<i64: 16, 10>}, {transform_indices = @transform_1, window_bounds = array<i64: 16, 64>}, {pipeline_mode = #tpu.pipeline_mode<synchronous>, transform_indices = @transform_2, window_bounds = array<i64: 10, 16>}, {pipeline_mode = #tpu.pipeline_mode<synchronous>, transform_indices = @transform_3, window_bounds = array<i64: 16, 32>}, {pipeline_mode = #tpu.pipeline_mode<synchronous>, transform_indices = @transform_4, window_bounds = array<i64: 32, 64>}, {transform_indices = @transform_5, window_bounds = array<i64: 16, 64>}]} {
    %c0 = arith.constant 0 : index
    %c0_0 = arith.constant 0 : index
    %0 = vector.load %arg1[%c0, %c0_0] : memref<16x10xf32, #tpu.memory_space<vmem>>, vector<16x10xf32>
    %c0_1 = arith.constant 0 : index
    %c0_2 = arith.constant 0 : index
    %1 = vector.load %arg3[%c0_1, %c0_2] : memref<10x16xf32, #tpu.memory_space<vmem>>, vector<10x16xf32>
    %cst = arith.constant dense<0.000000e+00> : vector<16x16xf32>
    %2 = tpu.matmul %0, %1, %cst {dimension_numbers = #tpu.dot_dimension_numbers<[1], [0], [0], [1], [0, 0, 1, 1], [], []>, precision = #tpu.contract_precision<fp32>} : vector<16x10xf32>, vector<10x16xf32>, vector<16x16xf32> -> vector<16x16xf32>
    %3 = math.tanh %2 : vector<16x16xf32>
    %c0_3 = arith.constant 0 : index
    %c0_4 = arith.constant 0 : index
    %4 = vector.load %arg4[%c0_3, %c0_4] : memref<16x32xf32, #tpu.memory_space<vmem>>, vector<16x32xf32>
    %cst_5 = arith.constant dense<0.000000e+00> : vector<16x32xf32>
    %5 = tpu.matmul %3, %4, %cst_5 {dimension_numbers = #tpu.dot_dimension_numbers<[1], [0], [0], [1], [0, 0, 1, 1], [], []>, precision = #tpu.contract_precision<fp32>} : vector<16x16xf32>, vector<16x32xf32>, vector<16x32xf32> -> vector<16x32xf32>
    %6 = math.tanh %5 : vector<16x32xf32>
    %c0_6 = arith.constant 0 : index
    %c0_7 = arith.constant 0 : index
    %7 = vector.load %arg5[%c0_6, %c0_7] : memref<32x64xf32, #tpu.memory_space<vmem>>, vector<32x64xf32>
    %cst_8 = arith.constant dense<0.000000e+00> : vector<16x64xf32>
    %8 = tpu.matmul %6, %7, %cst_8 {dimension_numbers = #tpu.dot_dimension_numbers<[1], [0], [0], [1], [0, 0, 1, 1], [], []>, precision = #tpu.contract_precision<fp32>} : vector<16x32xf32>, vector<32x64xf32>, vector<16x64xf32> -> vector<16x64xf32>
    %c0_9 = arith.constant 0 : index
    %c0_10 = arith.constant 0 : index
    %9 = vector.load %arg2[%c0_9, %c0_10] : memref<16x64xf32, #tpu.memory_space<vmem>>, vector<16x64xf32>
    %10 = arith.addf %8, %9 : vector<16x64xf32>
    %c0_11 = arith.constant 0 : index
    %c0_12 = arith.constant 0 : index
    %11 = vector.load %arg6[%c0_11, %c0_12] : memref<16x64xf32, #tpu.memory_space<vmem>>, vector<16x64xf32>
    tpu.vector_store %arg6[%c0_11, %c0_12], %10 {strides = array<i32>} : memref<16x64xf32, #tpu.memory_space<vmem>>, vector<16x64xf32>,
    return
  }
  func.func @transform_0(%arg0: i32) -> (i32, i32) {
    %c0_i32 = arith.constant 0 : i32
    %c0_i32_0 = arith.constant 0 : i32
    return %arg0, %c0_i32 : i32, i32
  }
  func.func @transform_1(%arg0: i32) -> (i32, i32) {
    %c0_i32 = arith.constant 0 : i32
    %c0_i32_0 = arith.constant 0 : i32
    return %arg0, %c0_i32 : i32, i32
  }
  func.func @transform_2(%arg0: i32) -> (i32, i32) {
    %c0_i32 = arith.constant 0 : i32
    %c0_i32_0 = arith.constant 0 : i32
    %c0_i32_1 = arith.constant 0 : i32
    return %c0_i32, %c0_i32_0 : i32, i32
  }
  func.func @transform_3(%arg0: i32) -> (i32, i32) {
    %c0_i32 = arith.constant 0 : i32
    %c0_i32_0 = arith.constant 0 : i32
    %c0_i32_1 = arith.constant 0 : i32
    return %c0_i32, %c0_i32_0 : i32, i32
  }
  func.func @transform_4(%arg0: i32) -> (i32, i32) {
    %c0_i32 = arith.constant 0 : i32
    %c0_i32_0 = arith.constant 0 : i32
    %c0_i32_1 = arith.constant 0 : i32
    return %c0_i32, %c0_i32_0 : i32, i32
  }
  func.func @transform_5(%arg0: i32) -> (i32, i32) {
    %c0_i32 = arith.constant 0 : i32
    %c0_i32_0 = arith.constant 0 : i32
    return %arg0, %c0_i32 : i32, i32
  }
}

</mosaic_0001>

<llo_original>
// kernel: tpu_custom_call.1
$region0: #{tpu_custom_call.1}
  #allocation0 [shape = 'u32[]', space=smem, size = 0x4, offset = 0x4, fixed_abs, tag = 'smem constant byte address 0x4 - core index']
  #allocation1 [shape = 'u32[72,128]{1,0:T(1,128)}', space=vmem, size = 0x9000, scoped, tag = 'internal scratch']
  %s0 = inlined_call_operand.hbm [shape: f32[16,10], index: 0, kind: input, shape index: {}]
  %s1 = inlined_call_operand.hbm [shape: f32[16,64], index: 1, kind: input, shape index: {}]
  %s2 = inlined_call_operand.hbm [shape: f32[10,16], index: 2, kind: input, shape index: {}]
  %s3 = inlined_call_operand.hbm [shape: f32[16,32], index: 3, kind: input, shape index: {}]
  %s4 = inlined_call_operand.hbm [shape: f32[32,64], index: 4, kind: input, shape index: {}]
  %s5 = inlined_call_operand.hbm [shape: f32[16,64], index: 5, kind: output, shape index: {}]
  %s6 = sld [smem:[#allocation0]]
  $region50: #{tpu_custom_call.1} parent=0
    _
  %s8 = ssub.s32 1, %s6
  %s9 = scalar_select 0, %s8, %s6
  $region1: #{tpu_custom_call.1} parent=0
    #allocation2 [shape = 'u8[8192]{0}', space=vmem, size = 0x2000, scoped, tag = 'input window, operand 0, single buffered']
    #allocation3 [shape = 's32[1]{0}', space=sflag, size = 0x4, scoped, tag = 'scoped memory for tpu_custom_call.1']
    #allocation4 [shape = 's32[1]{0}', space=sflag, size = 0x4, scoped, tag = 'scoped memory for tpu_custom_call.1']
    #allocation5 [shape = 'u8[8192]{0}', space=vmem, size = 0x2000, scoped, tag = 'input window, operand 1, single buffered']
    #allocation6 [shape = 's32[1]{0}', space=sflag, size = 0x4, scoped, tag = 'scoped memory for tpu_custom_call.1']
    #allocation7 [shape = 'u8[8192]{0}', space=vmem, size = 0x2000, scoped, tag = 'input window, operand 2, single buffered']
    #allocation8 [shape = 'u8[8192]{0}', space=vmem, size = 0x2000, scoped, tag = 'input window, operand 3, single buffered']
    #allocation9 [shape = 's32[1]{0}', space=sflag, size = 0x4, scoped, tag = 'scoped memory for tpu_custom_call.1']
    #allocation10 [shape = 'u8[16384]{0}', space=vmem, size = 0x4000, scoped, tag = 'input window, operand 4, single buffered']
    #allocation11 [shape = 'u8[8192]{0}', space=vmem, size = 0x2000, scoped, tag = 'output window, operand 0, single buffered']
    %10 = vsyncpa [#allocation3], 0
    %11 = vsyncpa [#allocation6], 0
    %12 = vsyncpa [#allocation9], 0
    %13 = vsyncpa [#allocation4], 0
    // Predicated region
    $region2: #{tpu_custom_call.1} parent=1 // pred_check
      _
    $region3: #{tpu_custom_call.1} parent=1 // pred_check_branch
      %15 = sbr.rel (0) target = $region5
    $region4: #{tpu_custom_call.1} parent=1 // pred_region
      %17 = vsyncadd [#allocation3], 0
      %s18 = sshll.u32 %s0, 4
      %s19 = int_to_ptr.hbm [resolvable:$true] %s18
      %s20 = sshll.u32 [#allocation2], 4
      %s21 = int_to_ptr.vmem [resolvable:$true] %s20
      %26 = dma.hbm_to_vmem [thread:$0]  %s19, 256, %s21, [#allocation3], 128, 128, 8
    $region5: #{tpu_custom_call.1} parent=1 // pred_fallthru
      _
    // Predicated region
    $region6: #{tpu_custom_call.1} parent=1 // pred_check
      _
    $region7: #{tpu_custom_call.1} parent=1 // pred_check_branch
      %28 = sbr.rel (0) target = $region9
    $region8: #{tpu_custom_call.1} parent=1 // pred_region
      %30 = vsyncadd [#allocation6], 0
      %s31 = sshll.u32 %s1, 4
      %s32 = int_to_ptr.hbm [resolvable:$true] %s31
      %s33 = sshll.u32 [#allocation5], 4
      %s34 = int_to_ptr.vmem [resolvable:$true] %s33
      %39 = dma.hbm_to_vmem [thread:$0]  %s32, 256, %s34, [#allocation6], 128, 128, 8
    $region9: #{tpu_custom_call.1} parent=1 // pred_fallthru
      _
    // Predicated region
    $region10: #{tpu_custom_call.1} parent=1 // pred_check
      _
    $region11: #{tpu_custom_call.1} parent=1 // pred_check_branch
      %41 = sbr.rel (0) target = $region13
    $region12: #{tpu_custom_call.1} parent=1 // pred_region
      %43 = vsyncadd [#allocation6], 0
      %s44 = sshll.u32 %s2, 4
      %s45 = int_to_ptr.hbm [resolvable:$true] %s44
      %s46 = sshll.u32 [#allocation7], 4
      %s47 = int_to_ptr.vmem [resolvable:$true] %s46
      %52 = dma.hbm_to_vmem [thread:$0]  %s45, 256, %s47, [#allocation6], 128, 128, 8
    $region13: #{tpu_custom_call.1} parent=1 // pred_fallthru
      _
    // Predicated region
    $region14: #{tpu_custom_call.1} parent=1 // pred_check
      _
    $region15: #{tpu_custom_call.1} parent=1 // pred_check_branch
      %54 = sbr.rel (0) target = $region17
    $region16: #{tpu_custom_call.1} parent=1 // pred_region
      %56 = vsyncadd [#allocation9], 0
      %s57 = sshll.u32 %s3, 4
      %s58 = int_to_ptr.hbm [resolvable:$true] %s57
      %s59 = sshll.u32 [#allocation8], 4
      %s60 = int_to_ptr.vmem [resolvable:$true] %s59
      %65 = dma.hbm_to_vmem [thread:$0]  %s58, 256, %s60, [#allocation9], 128, 128, 8
    $region17: #{tpu_custom_call.1} parent=1 // pred_fallthru
      _
    // Predicated region
    $region18: #{tpu_custom_call.1} parent=1 // pred_check
      _
    $region19: #{tpu_custom_call.1} parent=1 // pred_check_branch
      %67 = sbr.rel (0) target = $region21
    $region20: #{tpu_custom_call.1} parent=1 // pred_region
      %69 = vsyncadd [#allocation9], 0
      %s70 = sshll.u32 %s4, 4
      %s71 = int_to_ptr.hbm [resolvable:$true] %s70
      %s72 = sshll.u32 [#allocation10], 4
      %s73 = int_to_ptr.vmem [resolvable:$true] %s72
      %78 = dma.hbm_to_vmem [thread:$0]  %s71, 512, %s73, [#allocation9], 128, 128, 8
    $region21: #{tpu_custom_call.1} parent=1 // pred_fallthru
      _
    // Predicated region
    $region22: #{tpu_custom_call.1} parent=1 // pred_check
      _
    $region23: #{tpu_custom_call.1} parent=1 // pred_check_branch
      %80 = sbr.rel (0) target = $region25
    $region24: #{tpu_custom_call.1} parent=1 // pred_region
      %82 = dma.done [#allocation3], 256
    $region25: #{tpu_custom_call.1} parent=1 // pred_fallthru
      _
    // Predicated region
    $region26: #{tpu_custom_call.1} parent=1 // pred_check
      _
    $region27: #{tpu_custom_call.1} parent=1 // pred_check_branch
      %84 = sbr.rel (0) target = $region29
    $region28: #{tpu_custom_call.1} parent=1 // pred_region
      %86 = dma.done [#allocation6], 256
    $region29: #{tpu_custom_call.1} parent=1 // pred_fallthru
      _
    // Predicated region
    $region30: #{tpu_custom_call.1} parent=1 // pred_check
      _
    $region31: #{tpu_custom_call.1} parent=1 // pred_check_branch
      %88 = sbr.rel (0) target = $region33
    $region32: #{tpu_custom_call.1} parent=1 // pred_region
      %90 = dma.done [#allocation6], 256
    $region33: #{tpu_custom_call.1} parent=1 // pred_fallthru
      _
    // Predicated region
    $region34: #{tpu_custom_call.1} parent=1 // pred_check
      _
    $region35: #{tpu_custom_call.1} parent=1 // pred_check_branch
      %92 = sbr.rel (0) target = $region37
    $region36: #{tpu_custom_call.1} parent=1 // pred_region
      %94 = dma.done [#allocation9], 256
    $region37: #{tpu_custom_call.1} parent=1 // pred_fallthru
      _
    // Predicated region
    $region38: #{tpu_custom_call.1} parent=1 // pred_check
      _
    $region39: #{tpu_custom_call.1} parent=1 // pred_check_branch
      %96 = sbr.rel (0) target = $region41
    $region40: #{tpu_custom_call.1} parent=1 // pred_region
      %98 = dma.done [#allocation9], 512
    $region41: #{tpu_custom_call.1} parent=1 // pred_fallthru
      _
    %v99 = vld [vmem:[#allocation2] sm:$0xff]
    %v100 = vld [vmem:[#allocation2 + $0x8] sm:$0xff]
    %v101 = vld [vmem:[#allocation7] sm:$0xff]
    %v102 = vld [vmem:[#allocation7 + $0x8] sm:$0x3]
    %vm103 = vcmask 80896
    %v105 = vsel %vm103, %v99, 0
    %v108 = vsel %vm103, %v100, 0
    %vm110 = vcmask 1041408
    %v112 = vsel %vm110, %v102, 0
    %114 = vmatpush.msra.mxu0 0.0
    %115 = vmatpush.msra.mxu0 0.0
    %116 = vmatpush.msra.mxu0 0.0
    %117 = vmatpush.msra.mxu0 0.0
    %118 = vmatpush.msra.mxu0 0.0
    %119 = vmatpush.msra.mxu0 0.0
    %120 = vmatpush.msra.mxu0 0.0
    %121 = vmatpush.msra.mxu0 0.0
    %122 = vmatpush.msra.mxu0 0.0
    %123 = vmatpush.msra.mxu0 0.0
    %124 = vmatpush.msra.mxu0 0.0
    %125 = vmatpush.msra.mxu0 0.0
    %126 = vmatpush.msra.mxu0 0.0
    %127 = vmatpush.msra.mxu0 0.0
    %v128 = vand.u32 %v112, 4294901760
    %129 = vmatpush.msra.mxu0 %v128
    %v130 = vand.u32 %v101, 4294901760
    %131 = vmatpush.msra.mxu0 %v130
    %v132 = vand.u32 %v105, 4294901760
    %v133 = vsub.f32 %v105, %v132
    %v134 = vand.u32 %v133, 4294901760
    %v135 = vsub.f32 %v133, %v134
    %v136 = vand.u32 %v135, 4294901760
    %137 = vmatmul.f32.gmra.mxu0 %v136
    %v138 = vpop.f32.mrf.mxu0
    %v139 = vadd.f32 0.0, %v138
    %v140 = vand.u32 %v108, 4294901760
    %v141 = vsub.f32 %v108, %v140
    %v142 = vand.u32 %v141, 4294901760
    %v143 = vsub.f32 %v141, %v142
    %v144 = vand.u32 %v143, 4294901760
    %145 = vmatmul.f32.gmra.mxu0 %v144
    %v146 = vpop.f32.mrf.mxu0
    %v147 = vadd.f32 0.0, %v146
    %148 = vdwg.mxu0
    %149 = vmatpush.msra.mxu0 0.0
    %150 = vmatpush.msra.mxu0 0.0
    %151 = vmatpush.msra.mxu0 0.0
    %152 = vmatpush.msra.mxu0 0.0
    %153 = vmatpush.msra.mxu0 0.0
    %154 = vmatpush.msra.mxu0 0.0
    %155 = vmatpush.msra.mxu0 0.0
    %156 = vmatpush.msra.mxu0 0.0
    %157 = vmatpush.msra.mxu0 0.0
    %158 = vmatpush.msra.mxu0 0.0
    %159 = vmatpush.msra.mxu0 0.0
    %160 = vmatpush.msra.mxu0 0.0
    %161 = vmatpush.msra.mxu0 0.0
    %162 = vmatpush.msra.mxu0 0.0
    %v163 = vand.u32 %v112, 4294901760
    %v164 = vsub.f32 %v112, %v163
    %v165 = vand.u32 %v164, 4294901760
    %v166 = vsub.f32 %v164, %v165
    %v167 = vand.u32 %v166, 4294901760
    %168 = vmatpush.msra.mxu0 %v167
    %v169 = vand.u32 %v101, 4294901760
    %v170 = vsub.f32 %v101, %v169
    %v171 = vand.u32 %v170, 4294901760
    %v172 = vsub.f32 %v170, %v171
    %v173 = vand.u32 %v172, 4294901760
    %174 = vmatpush.msra.mxu0 %v173
    %v175 = vand.u32 %v105, 4294901760
    %176 = vmatmul.f32.gmra.mxu0 %v175
    %v177 = vpop.f32.mrf.mxu0
    %v178 = vadd.f32 %v139, %v177
    %v179 = vand.u32 %v108, 4294901760
    %180 = vmatmul.f32.gmra.mxu0 %v179
    %v181 = vpop.f32.mrf.mxu0
    %v182 = vadd.f32 %v147, %v181
    %183 = vdwg.mxu0
    %184 = vmatpush.msra.mxu0 0.0
    %185 = vmatpush.msra.mxu0 0.0
    %186 = vmatpush.msra.mxu0 0.0
    %187 = vmatpush.msra.mxu0 0.0
    %188 = vmatpush.msra.mxu0 0.0
    %189 = vmatpush.msra.mxu0 0.0
    %190 = vmatpush.msra.mxu0 0.0
    %191 = vmatpush.msra.mxu0 0.0
    %192 = vmatpush.msra.mxu0 0.0
    %193 = vmatpush.msra.mxu0 0.0
    %194 = vmatpush.msra.mxu0 0.0
    %195 = vmatpush.msra.mxu0 0.0
    %196 = vmatpush.msra.mxu0 0.0
    %197 = vmatpush.msra.mxu0 0.0
    %v198 = vand.u32 %v112, 4294901760
    %v199 = vsub.f32 %v112, %v198
    %200 = vmatpush.msra.mxu0 %v199
    %v201 = vand.u32 %v101, 4294901760
    %v202 = vsub.f32 %v101, %v201
    %203 = vmatpush.msra.mxu0 %v202
    %v204 = vand.u32 %v105, 4294901760
    %v205 = vsub.f32 %v105, %v204
    %206 = vmatmul.f32.gmra.mxu0 %v205
    %v207 = vpop.f32.mrf.mxu0
    %v208 = vadd.f32 %v178, %v207
    %v209 = vand.u32 %v108, 4294901760
    %v210 = vsub.f32 %v108, %v209
    %211 = vmatmul.f32.gmra.mxu0 %v210
    %v212 = vpop.f32.mrf.mxu0
    %v213 = vadd.f32 %v182, %v212
    %214 = vdwg.mxu0
    %215 = vmatpush.msra.mxu0 0.0
    %216 = vmatpush.msra.mxu0 0.0
    %217 = vmatpush.msra.mxu0 0.0
    %218 = vmatpush.msra.mxu0 0.0
    %219 = vmatpush.msra.mxu0 0.0
    %220 = vmatpush.msra.mxu0 0.0
    %221 = vmatpush.msra.mxu0 0.0
    %222 = vmatpush.msra.mxu0 0.0
    %223 = vmatpush.msra.mxu0 0.0
    %224 = vmatpush.msra.mxu0 0.0
    %225 = vmatpush.msra.mxu0 0.0
    %226 = vmatpush.msra.mxu0 0.0
    %227 = vmatpush.msra.mxu0 0.0
    %228 = vmatpush.msra.mxu0 0.0
    %v229 = vand.u32 %v112, 4294901760
    %230 = vmatpush.msra.mxu0 %v229
    %v231 = vand.u32 %v101, 4294901760
    %232 = vmatpush.msra.mxu0 %v231
    %v233 = vand.u32 %v105, 4294901760
    %v234 = vsub.f32 %v105, %v233
    %v235 = vand.u32 %v234, 4294901760
    %236 = vmatmul.f32.gmra.mxu0 %v235
    %v237 = vpop.f32.mrf.mxu0
    %v238 = vadd.f32 %v208, %v237
    %v239 = vand.u32 %v108, 4294901760
    %v240 = vsub.f32 %v108, %v239
    %v241 = vand.u32 %v240, 4294901760
    %242 = vmatmul.f32.gmra.mxu0 %v241
    %v243 = vpop.f32.mrf.mxu0
    %v244 = vadd.f32 %v213, %v243
    %245 = vdwg.mxu0
    %246 = vmatpush.msra.mxu0 0.0
    %247 = vmatpush.msra.mxu0 0.0
    %248 = vmatpush.msra.mxu0 0.0
    %249 = vmatpush.msra.mxu0 0.0
    %250 = vmatpush.msra.mxu0 0.0
    %251 = vmatpush.msra.mxu0 0.0
    %252 = vmatpush.msra.mxu0 0.0
    %253 = vmatpush.msra.mxu0 0.0
    %254 = vmatpush.msra.mxu0 0.0
    %255 = vmatpush.msra.mxu0 0.0
    %256 = vmatpush.msra.mxu0 0.0
    %257 = vmatpush.msra.mxu0 0.0
    %258 = vmatpush.msra.mxu0 0.0
    %259 = vmatpush.msra.mxu0 0.0
    %v260 = vand.u32 %v112, 4294901760
    %v261 = vsub.f32 %v112, %v260
    %v262 = vand.u32 %v261, 4294901760
    %263 = vmatpush.msra.mxu0 %v262
    %v264 = vand.u32 %v101, 4294901760
    %v265 = vsub.f32 %v101, %v264
    %v266 = vand.u32 %v265, 4294901760
    %267 = vmatpush.msra.mxu0 %v266
    %v268 = vand.u32 %v105, 4294901760
    %269 = vmatmul.f32.gmra.mxu0 %v268
    %v270 = vpop.f32.mrf.mxu0
    %v271 = vadd.f32 %v238, %v270
    %v272 = vand.u32 %v108, 4294901760
    %273 = vmatmul.f32.gmra.mxu0 %v272
    %v274 = vpop.f32.mrf.mxu0
    %v275 = vadd.f32 %v244, %v274
    %276 = vdwg.mxu0
    %277 = vmatpush.msra.mxu0 0.0
    %278 = vmatpush.msra.mxu0 0.0
    %279 = vmatpush.msra.mxu0 0.0
    %280 = vmatpush.msra.mxu0 0.0
    %281 = vmatpush.msra.mxu0 0.0
    %282 = vmatpush.msra.mxu0 0.0
    %283 = vmatpush.msra.mxu0 0.0
    %284 = vmatpush.msra.mxu0 0.0
    %285 = vmatpush.msra.mxu0 0.0
    %286 = vmatpush.msra.mxu0 0.0
    %287 = vmatpush.msra.mxu0 0.0
    %288 = vmatpush.msra.mxu0 0.0
    %289 = vmatpush.msra.mxu0 0.0
    %290 = vmatpush.msra.mxu0 0.0
    %v291 = vand.u32 %v112, 4294901760
    %292 = vmatpush.msra.mxu0 %v291
    %v293 = vand.u32 %v101, 4294901760
    %294 = vmatpush.msra.mxu0 %v293
    %v295 = vand.u32 %v105, 4294901760
    %296 = vmatmul.f32.gmra.mxu0 %v295
    %v297 = vpop.f32.mrf.mxu0
    %v298 = vadd.f32 %v271, %v297
    %v299 = vand.u32 %v108, 4294901760
    %300 = vmatmul.f32.gmra.mxu0 %v299
    %v301 = vpop.f32.mrf.mxu0
    %v302 = vadd.f32 %v275, %v301
    %303 = vdwg.mxu0
    %v304 = vtanh.pop %v298
    %v305 = vtanh.pop %v302
    %v306 = vld [vmem:[#allocation8] sm:$0xff]
    %v307 = vld [vmem:[#allocation8 + $0x8] sm:$0xff]
    %vm308 = vcmask 130048
    %v310 = vsel %vm308, %v304, 0
    %v313 = vsel %vm308, %v305, 0
    %315 = vmatpush.msra.mxu0 0.0
    %316 = vmatpush.msra.mxu0 0.0
    %317 = vmatpush.msra.mxu0 0.0
    %318 = vmatpush.msra.mxu0 0.0
    %319 = vmatpush.msra.mxu0 0.0
    %320 = vmatpush.msra.mxu0 0.0
    %321 = vmatpush.msra.mxu0 0.0
    %322 = vmatpush.msra.mxu0 0.0
    %323 = vmatpush.msra.mxu0 0.0
    %324 = vmatpush.msra.mxu0 0.0
    %325 = vmatpush.msra.mxu0 0.0
    %326 = vmatpush.msra.mxu0 0.0
    %327 = vmatpush.msra.mxu0 0.0
    %328 = vmatpush.msra.mxu0 0.0
    %v329 = vand.u32 %v307, 4294901760
    %330 = vmatpush.msra.mxu0 %v329
    %v331 = vand.u32 %v306, 4294901760
    %332 = vmatpush.msra.mxu0 %v331
    %v333 = vand.u32 %v310, 4294901760
    %v334 = vsub.f32 %v310, %v333
    %v335 = vand.u32 %v334, 4294901760
    %v336 = vsub.f32 %v334, %v335
    %v337 = vand.u32 %v336, 4294901760
    %338 = vmatmul.f32.gmra.mxu0 %v337
    %v339 = vpop.f32.mrf.mxu0
    %v340 = vadd.f32 0.0, %v339
    %v341 = vand.u32 %v313, 4294901760
    %v342 = vsub.f32 %v313, %v341
    %v343 = vand.u32 %v342, 4294901760
    %v344 = vsub.f32 %v342, %v343
    %v345 = vand.u32 %v344, 4294901760
    %346 = vmatmul.f32.gmra.mxu0 %v345
    %v347 = vpop.f32.mrf.mxu0
    %v348 = vadd.f32 0.0, %v347
    %349 = vdwg.mxu0
    %350 = vmatpush.msra.mxu0 0.0
    %351 = vmatpush.msra.mxu0 0.0
    %352 = vmatpush.msra.mxu0 0.0
    %353 = vmatpush.msra.mxu0 0.0
    %354 = vmatpush.msra.mxu0 0.0
    %355 = vmatpush.msra.mxu0 0.0
    %356 = vmatpush.msra.mxu0 0.0
    %357 = vmatpush.msra.mxu0 0.0
    %358 = vmatpush.msra.mxu0 0.0
    %359 = vmatpush.msra.mxu0 0.0
    %360 = vmatpush.msra.mxu0 0.0
    %361 = vmatpush.msra.mxu0 0.0
    %362 = vmatpush.msra.mxu0 0.0
    %363 = vmatpush.msra.mxu0 0.0
    %v364 = vand.u32 %v307, 4294901760
    %v365 = vsub.f32 %v307, %v364
    %v366 = vand.u32 %v365, 4294901760
    %v367 = vsub.f32 %v365, %v366
    %v368 = vand.u32 %v367, 4294901760
    %369 = vmatpush.msra.mxu0 %v368
    %v370 = vand.u32 %v306, 4294901760
    %v371 = vsub.f32 %v306, %v370
    %v372 = vand.u32 %v371, 4294901760
    %v373 = vsub.f32 %v371, %v372
    %v374 = vand.u32 %v373, 4294901760
    %375 = vmatpush.msra.mxu0 %v374
    %v376 = vand.u32 %v310, 4294901760
    %377 = vmatmul.f32.gmra.mxu0 %v376
    %v378 = vpop.f32.mrf.mxu0
    %v379 = vadd.f32 %v340, %v378
    %v380 = vand.u32 %v313, 4294901760
    %381 = vmatmul.f32.gmra.mxu0 %v380
    %v382 = vpop.f32.mrf.mxu0
    %v383 = vadd.f32 %v348, %v382
    %384 = vdwg.mxu0
    %385 = vmatpush.msra.mxu0 0.0
    %386 = vmatpush.msra.mxu0 0.0
    %387 = vmatpush.msra.mxu0 0.0
    %388 = vmatpush.msra.mxu0 0.0
    %389 = vmatpush.msra.mxu0 0.0
    %390 = vmatpush.msra.mxu0 0.0
    %391 = vmatpush.msra.mxu0 0.0
    %392 = vmatpush.msra.mxu0 0.0
    %393 = vmatpush.msra.mxu0 0.0
    %394 = vmatpush.msra.mxu0 0.0
    %395 = vmatpush.msra.mxu0 0.0
    %396 = vmatpush.msra.mxu0 0.0
    %397 = vmatpush.msra.mxu0 0.0
    %398 = vmatpush.msra.mxu0 0.0
    %v399 = vand.u32 %v307, 4294901760
    %v400 = vsub.f32 %v307, %v399
    %401 = vmatpush.msra.mxu0 %v400
    %v402 = vand.u32 %v306, 4294901760
    %v403 = vsub.f32 %v306, %v402
    %404 = vmatpush.msra.mxu0 %v403
    %v405 = vand.u32 %v310, 4294901760
    %v406 = vsub.f32 %v310, %v405
    %407 = vmatmul.f32.gmra.mxu0 %v406
    %v408 = vpop.f32.mrf.mxu0
    %v409 = vadd.f32 %v379, %v408
    %v410 = vand.u32 %v313, 4294901760
    %v411 = vsub.f32 %v313, %v410
    %412 = vmatmul.f32.gmra.mxu0 %v411
    %v413 = vpop.f32.mrf.mxu0
    %v414 = vadd.f32 %v383, %v413
    %415 = vdwg.mxu0
    %416 = vmatpush.msra.mxu0 0.0
    %417 = vmatpush.msra.mxu0 0.0
    %418 = vmatpush.msra.mxu0 0.0
    %419 = vmatpush.msra.mxu0 0.0
    %420 = vmatpush.msra.mxu0 0.0
    %421 = vmatpush.msra.mxu0 0.0
    %422 = vmatpush.msra.mxu0 0.0
    %423 = vmatpush.msra.mxu0 0.0
    %424 = vmatpush.msra.mxu0 0.0
    %425 = vmatpush.msra.mxu0 0.0
    %426 = vmatpush.msra.mxu0 0.0
    %427 = vmatpush.msra.mxu0 0.0
    %428 = vmatpush.msra.mxu0 0.0
    %429 = vmatpush.msra.mxu0 0.0
    %v430 = vand.u32 %v307, 4294901760
    %431 = vmatpush.msra.mxu0 %v430
    %v432 = vand.u32 %v306, 4294901760
    %433 = vmatpush.msra.mxu0 %v432
    %v434 = vand.u32 %v310, 4294901760
    %v435 = vsub.f32 %v310, %v434
    %v436 = vand.u32 %v435, 4294901760
    %437 = vmatmul.f32.gmra.mxu0 %v436
    %v438 = vpop.f32.mrf.mxu0
    %v439 = vadd.f32 %v409, %v438
    %v440 = vand.u32 %v313, 4294901760
    %v441 = vsub.f32 %v313, %v440
    %v442 = vand.u32 %v441, 4294901760
    %443 = vmatmul.f32.gmra.mxu0 %v442
    %v444 = vpop.f32.mrf.mxu0
    %v445 = vadd.f32 %v414, %v444
    %446 = vdwg.mxu0
    %447 = vmatpush.msra.mxu0 0.0
    %448 = vmatpush.msra.mxu0 0.0
    %449 = vmatpush.msra.mxu0 0.0
    %450 = vmatpush.msra.mxu0 0.0
    %451 = vmatpush.msra.mxu0 0.0
    %452 = vmatpush.msra.mxu0 0.0
    %453 = vmatpush.msra.mxu0 0.0
    %454 = vmatpush.msra.mxu0 0.0
    %455 = vmatpush.msra.mxu0 0.0
    %456 = vmatpush.msra.mxu0 0.0
    %457 = vmatpush.msra.mxu0 0.0
    %458 = vmatpush.msra.mxu0 0.0
    %459 = vmatpush.msra.mxu0 0.0
    %460 = vmatpush.msra.mxu0 0.0
    %v461 = vand.u32 %v307, 4294901760
    %v462 = vsub.f32 %v307, %v461
    %v463 = vand.u32 %v462, 4294901760
    %464 = vmatpush.msra.mxu0 %v463
    %v465 = vand.u32 %v306, 4294901760
    %v466 = vsub.f32 %v306, %v465
    %v467 = vand.u32 %v466, 4294901760
    %468 = vmatpush.msra.mxu0 %v467
    %v469 = vand.u32 %v310, 4294901760
    %470 = vmatmul.f32.gmra.mxu0 %v469
    %v471 = vpop.f32.mrf.mxu0
    %v472 = vadd.f32 %v439, %v471
    %v473 = vand.u32 %v313, 4294901760
    %474 = vmatmul.f32.gmra.mxu0 %v473
    %v475 = vpop.f32.mrf.mxu0
    %v476 = vadd.f32 %v445, %v475
    %477 = vdwg.mxu0
    %478 = vmatpush.msra.mxu0 0.0
    %479 = vmatpush.msra.mxu0 0.0
    %480 = vmatpush.msra.mxu0 0.0
    %481 = vmatpush.msra.mxu0 0.0
    %482 = vmatpush.msra.mxu0 0.0
    %483 = vmatpush.msra.mxu0 0.0
    %484 = vmatpush.msra.mxu0 0.0
    %485 = vmatpush.msra.mxu0 0.0
    %486 = vmatpush.msra.mxu0 0.0
    %487 = vmatpush.msra.mxu0 0.0
    %488 = vmatpush.msra.mxu0 0.0
    %489 = vmatpush.msra.mxu0 0.0
    %490 = vmatpush.msra.mxu0 0.0
    %491 = vmatpush.msra.mxu0 0.0
    %v492 = vand.u32 %v307, 4294901760
    %493 = vmatpush.msra.mxu0 %v492
    %v494 = vand.u32 %v306, 4294901760
    %495 = vmatpush.msra.mxu0 %v494
    %v496 = vand.u32 %v310, 4294901760
    %497 = vmatmul.f32.gmra.mxu0 %v496
    %v498 = vpop.f32.mrf.mxu0
    %v499 = vadd.f32 %v472, %v498
    %v500 = vand.u32 %v313, 4294901760
    %501 = vmatmul.f32.gmra.mxu0 %v500
    %v502 = vpop.f32.mrf.mxu0
    %v503 = vadd.f32 %v476, %v502
    %504 = vdwg.mxu0
    %v505 = vtanh.pop %v499
    %v506 = vtanh.pop %v503
    %v507 = vld [vmem:[#allocation10] sm:$0xff]
    %v508 = vld [vmem:[#allocation10 + $0x8] sm:$0xff]
    %v509 = vld [vmem:[#allocation10 + $0x10] sm:$0xff]
    %v510 = vld [vmem:[#allocation10 + $0x18] sm:$0xff]
    %v511 = vld [vmem:[#allocation5] sm:$0xff]
    %v512 = vld [vmem:[#allocation5 + $0x8] sm:$0xff]
    %vm513 = vcmask 261120
    %v515 = vsel %vm513, %v505, 0
    %v518 = vsel %vm513, %v506, 0
    %520 = vmatpush.msra.mxu0 0.0
    %521 = vmatpush.msra.mxu0 0.0
    %522 = vmatpush.msra.mxu0 0.0
    %523 = vmatpush.msra.mxu0 0.0
    %524 = vmatpush.msra.mxu0 0.0
    %525 = vmatpush.msra.mxu0 0.0
    %526 = vmatpush.msra.mxu0 0.0
    %527 = vmatpush.msra.mxu0 0.0
    %528 = vmatpush.msra.mxu0 0.0
    %529 = vmatpush.msra.mxu0 0.0
    %530 = vmatpush.msra.mxu0 0.0
    %531 = vmatpush.msra.mxu0 0.0
    %v532 = vand.u32 %v510, 4294901760
    %533 = vmatpush.msra.mxu0 %v532
    %v534 = vand.u32 %v509, 4294901760
    %535 = vmatpush.msra.mxu0 %v534
    %v536 = vand.u32 %v508, 4294901760
    %537 = vmatpush.msra.mxu0 %v536
    %v538 = vand.u32 %v507, 4294901760
    %539 = vmatpush.msra.mxu0 %v538
    %v540 = vand.u32 %v515, 4294901760
    %v541 = vsub.f32 %v515, %v540
    %v542 = vand.u32 %v541, 4294901760
    %v543 = vsub.f32 %v541, %v542
    %v544 = vand.u32 %v543, 4294901760
    %545 = vmatmul.f32.gmra.mxu0 %v544
    %v546 = vpop.f32.mrf.mxu0
    %v547 = vadd.f32 %v511, %v546
    %v548 = vand.u32 %v518, 4294901760
    %v549 = vsub.f32 %v518, %v548
    %v550 = vand.u32 %v549, 4294901760
    %v551 = vsub.f32 %v549, %v550
    %v552 = vand.u32 %v551, 4294901760
    %553 = vmatmul.f32.gmra.mxu0 %v552
    %v554 = vpop.f32.mrf.mxu0
    %v555 = vadd.f32 %v512, %v554
    %556 = vdwg.mxu0
    %557 = vmatpush.msra.mxu0 0.0
    %558 = vmatpush.msra.mxu0 0.0
    %559 = vmatpush.msra.mxu0 0.0
    %560 = vmatpush.msra.mxu0 0.0
    %561 = vmatpush.msra.mxu0 0.0
    %562 = vmatpush.msra.mxu0 0.0
    %563 = vmatpush.msra.mxu0 0.0
    %564 = vmatpush.msra.mxu0 0.0
    %565 = vmatpush.msra.mxu0 0.0
    %566 = vmatpush.msra.mxu0 0.0
    %567 = vmatpush.msra.mxu0 0.0
    %568 = vmatpush.msra.mxu0 0.0
    %v569 = vand.u32 %v510, 4294901760
    %v570 = vsub.f32 %v510, %v569
    %v571 = vand.u32 %v570, 4294901760
    %v572 = vsub.f32 %v570, %v571
    %v573 = vand.u32 %v572, 4294901760
    %574 = vmatpush.msra.mxu0 %v573
    %v575 = vand.u32 %v509, 4294901760
    %v576 = vsub.f32 %v509, %v575
    %v577 = vand.u32 %v576, 4294901760
    %v578 = vsub.f32 %v576, %v577
    %v579 = vand.u32 %v578, 4294901760
    %580 = vmatpush.msra.mxu0 %v579
    %v581 = vand.u32 %v508, 4294901760
    %v582 = vsub.f32 %v508, %v581
    %v583 = vand.u32 %v582, 4294901760
    %v584 = vsub.f32 %v582, %v583
    %v585 = vand.u32 %v584, 4294901760
    %586 = vmatpush.msra.mxu0 %v585
    %v587 = vand.u32 %v507, 4294901760
    %v588 = vsub.f32 %v507, %v587
    %v589 = vand.u32 %v588, 4294901760
    %v590 = vsub.f32 %v588, %v589
    %v591 = vand.u32 %v590, 4294901760
    %592 = vmatpush.msra.mxu0 %v591
    %v593 = vand.u32 %v515, 4294901760
    %594 = vmatmul.f32.gmra.mxu0 %v593
    %v595 = vpop.f32.mrf.mxu0
    %v596 = vadd.f32 %v547, %v595
    %v597 = vand.u32 %v518, 4294901760
    %598 = vmatmul.f32.gmra.mxu0 %v597
    %v599 = vpop.f32.mrf.mxu0
    %v600 = vadd.f32 %v555, %v599
    %601 = vdwg.mxu0
    %602 = vmatpush.msra.mxu0 0.0
    %603 = vmatpush.msra.mxu0 0.0
    %604 = vmatpush.msra.mxu0 0.0
    %605 = vmatpush.msra.mxu0 0.0
    %606 = vmatpush.msra.mxu0 0.0
    %607 = vmatpush.msra.mxu0 0.0
    %608 = vmatpush.msra.mxu0 0.0
    %609 = vmatpush.msra.mxu0 0.0
    %610 = vmatpush.msra.mxu0 0.0
    %611 = vmatpush.msra.mxu0 0.0
    %612 = vmatpush.msra.mxu0 0.0
    %613 = vmatpush.msra.mxu0 0.0
    %v614 = vand.u32 %v510, 4294901760
    %v615 = vsub.f32 %v510, %v614
    %616 = vmatpush.msra.mxu0 %v615
    %v617 = vand.u32 %v509, 4294901760
    %v618 = vsub.f32 %v509, %v617
    %619 = vmatpush.msra.mxu0 %v618
    %v620 = vand.u32 %v508, 4294901760
    %v621 = vsub.f32 %v508, %v620
    %622 = vmatpush.msra.mxu0 %v621
    %v623 = vand.u32 %v507, 4294901760
    %v624 = vsub.f32 %v507, %v623
    %625 = vmatpush.msra.mxu0 %v624
    %v626 = vand.u32 %v515, 4294901760
    %v627 = vsub.f32 %v515, %v626
    %628 = vmatmul.f32.gmra.mxu0 %v627
    %v629 = vpop.f32.mrf.mxu0
    %v630 = vadd.f32 %v596, %v629
    %v631 = vand.u32 %v518, 4294901760
    %v632 = vsub.f32 %v518, %v631
    %633 = vmatmul.f32.gmra.mxu0 %v632
    %v634 = vpop.f32.mrf.mxu0
    %v635 = vadd.f32 %v600, %v634
    %636 = vdwg.mxu0
    %637 = vmatpush.msra.mxu0 0.0
    %638 = vmatpush.msra.mxu0 0.0
    %639 = vmatpush.msra.mxu0 0.0
    %640 = vmatpush.msra.mxu0 0.0
    %641 = vmatpush.msra.mxu0 0.0
    %642 = vmatpush.msra.mxu0 0.0
    %643 = vmatpush.msra.mxu0 0.0
    %644 = vmatpush.msra.mxu0 0.0
    %645 = vmatpush.msra.mxu0 0.0
    %646 = vmatpush.msra.mxu0 0.0
    %647 = vmatpush.msra.mxu0 0.0
    %648 = vmatpush.msra.mxu0 0.0
    %v649 = vand.u32 %v510, 4294901760
    %650 = vmatpush.msra.mxu0 %v649
    %v651 = vand.u32 %v509, 4294901760
    %652 = vmatpush.msra.mxu0 %v651
    %v653 = vand.u32 %v508, 4294901760
    %654 = vmatpush.msra.mxu0 %v653
    %v655 = vand.u32 %v507, 4294901760
    %656 = vmatpush.msra.mxu0 %v655
    %v657 = vand.u32 %v515, 4294901760
    %v658 = vsub.f32 %v515, %v657
    %v659 = vand.u32 %v658, 4294901760
    %660 = vmatmul.f32.gmra.mxu0 %v659
    %v661 = vpop.f32.mrf.mxu0
    %v662 = vadd.f32 %v630, %v661
    %v663 = vand.u32 %v518, 4294901760
    %v664 = vsub.f32 %v518, %v663
    %v665 = vand.u32 %v664, 4294901760
    %666 = vmatmul.f32.gmra.mxu0 %v665
    %v667 = vpop.f32.mrf.mxu0
    %v668 = vadd.f32 %v635, %v667
    %669 = vdwg.mxu0
    %670 = vmatpush.msra.mxu0 0.0
    %671 = vmatpush.msra.mxu0 0.0
    %672 = vmatpush.msra.mxu0 0.0
    %673 = vmatpush.msra.mxu0 0.0
    %674 = vmatpush.msra.mxu0 0.0
    %675 = vmatpush.msra.mxu0 0.0
    %676 = vmatpush.msra.mxu0 0.0
    %677 = vmatpush.msra.mxu0 0.0
    %678 = vmatpush.msra.mxu0 0.0
    %679 = vmatpush.msra.mxu0 0.0
    %680 = vmatpush.msra.mxu0 0.0
    %681 = vmatpush.msra.mxu0 0.0
    %v682 = vand.u32 %v510, 4294901760
    %v683 = vsub.f32 %v510, %v682
    %v684 = vand.u32 %v683, 4294901760
    %685 = vmatpush.msra.mxu0 %v684
    %v686 = vand.u32 %v509, 4294901760
    %v687 = vsub.f32 %v509, %v686
    %v688 = vand.u32 %v687, 4294901760
    %689 = vmatpush.msra.mxu0 %v688
    %v690 = vand.u32 %v508, 4294901760
    %v691 = vsub.f32 %v508, %v690
    %v692 = vand.u32 %v691, 4294901760
    %693 = vmatpush.msra.mxu0 %v692
    %v694 = vand.u32 %v507, 4294901760
    %v695 = vsub.f32 %v507, %v694
    %v696 = vand.u32 %v695, 4294901760
    %697 = vmatpush.msra.mxu0 %v696
    %v698 = vand.u32 %v515, 4294901760
    %699 = vmatmul.f32.gmra.mxu0 %v698
    %v700 = vpop.f32.mrf.mxu0
    %v701 = vadd.f32 %v662, %v700
    %v702 = vand.u32 %v518, 4294901760
    %703 = vmatmul.f32.gmra.mxu0 %v702
    %v704 = vpop.f32.mrf.mxu0
    %v705 = vadd.f32 %v668, %v704
    %706 = vdwg.mxu0
    %707 = vmatpush.msra.mxu0 0.0
    %708 = vmatpush.msra.mxu0 0.0
    %709 = vmatpush.msra.mxu0 0.0
    %710 = vmatpush.msra.mxu0 0.0
    %711 = vmatpush.msra.mxu0 0.0
    %712 = vmatpush.msra.mxu0 0.0
    %713 = vmatpush.msra.mxu0 0.0
    %714 = vmatpush.msra.mxu0 0.0
    %715 = vmatpush.msra.mxu0 0.0
    %716 = vmatpush.msra.mxu0 0.0
    %717 = vmatpush.msra.mxu0 0.0
    %718 = vmatpush.msra.mxu0 0.0
    %v719 = vand.u32 %v510, 4294901760
    %720 = vmatpush.msra.mxu0 %v719
    %v721 = vand.u32 %v509, 4294901760
    %722 = vmatpush.msra.mxu0 %v721
    %v723 = vand.u32 %v508, 4294901760
    %724 = vmatpush.msra.mxu0 %v723
    %v725 = vand.u32 %v507, 4294901760
    %726 = vmatpush.msra.mxu0 %v725
    %v727 = vand.u32 %v515, 4294901760
    %728 = vmatmul.f32.gmra.mxu0 %v727
    %v729 = vpop.f32.mrf.mxu0
    %v730 = vadd.f32 %v701, %v729
    %v731 = vand.u32 %v518, 4294901760
    %732 = vmatmul.f32.gmra.mxu0 %v731
    %v733 = vpop.f32.mrf.mxu0
    %v734 = vadd.f32 %v705, %v733
    %735 = vdwg.mxu0
    %vm736 = vcmask 523264
    %737 = vst.msk [vmem:[#allocation11] sm:$0xff] %vm736, %v730
    %738 = vst.msk [vmem:[#allocation11 + $0x8] sm:$0xff] %vm736, %v734
    // Predicated region
    $region42: #{tpu_custom_call.1} parent=1 // pred_check
      _
    $region43: #{tpu_custom_call.1} parent=1 // pred_check_branch
      %740 = sbr.rel (0) target = $region45
    $region44: #{tpu_custom_call.1} parent=1 // pred_region
      %742 = vsyncadd [#allocation4], 0
      %s743 = sshll.u32 [#allocation11], 4
      %s744 = int_to_ptr.vmem [resolvable:$true] %s743
      %s745 = sshll.u32 %s5, 4
      %s746 = int_to_ptr.hbm [resolvable:$true] %s745
      %751 = dma.vmem_to_hbm [thread:$0]  %s744, 256, %s746, [#allocation4], 128, 128, 8
    $region45: #{tpu_custom_call.1} parent=1 // pred_fallthru
      _
    // Predicated region
    $region46: #{tpu_custom_call.1} parent=1 // pred_check
      _
    $region47: #{tpu_custom_call.1} parent=1 // pred_check_branch
      %753 = sbr.rel (0) target = $region49
    $region48: #{tpu_custom_call.1} parent=1 // pred_region
      %755 = dma.done [#allocation4], 256
    $region49: #{tpu_custom_call.1} parent=1 // pred_fallthru
      _
    %756 = vsyncpa [#allocation3], 1
    %757 = vsyncpa [#allocation6], 1
    %758 = vsyncpa [#allocation9], 1
    %759 = vsyncpa [#allocation4], 1

</llo_original>
